<compile_context>
chip_gen: v7x
topology: tpu7x:2x2x1
jax: 0.10.0
libtpu: 0.0.40
codegen_flags: <defaults>
</compile_context>

<pallas_src>
import functools

import jax
import jax.numpy as jnp
from jax.experimental import pallas as pl
from jax.experimental.pallas import tpu as pltpu

_LANES = 128


def _tanh_kernel(re_ref, im_ref, ore_ref, oim_ref):
    # Elementwise tanh on each plane; transcendental rides the EUP slot.
    ore_ref[...] = jnp.tanh(re_ref[...])
    oim_ref[...] = jnp.tanh(im_ref[...])


def _choose_block_rows(rows: int, tile_rows: int) -> int:
    """Pick a sublane-aligned block height.

    Prefers large (~2 MiB) blocks for HBM roofline; for big tensors caps at
    ~rows/4 (when each piece is still >= 1024 rows / 512 KiB) so the
    'parallel' grid axis has enough steps to feed both v7x TensorCores.
    """
    tile_rows = max(8, (tile_rows // 8) * 8)
    if rows <= tile_rows:
        block = rows  # full-dim block: always legal regardless of alignment
    else:
        block = tile_rows  # multiple of 8: satisfies the (8, 128) rule
    quarter = ((rows // 4) // 8) * 8  # ~rows/4, sublane aligned
    if quarter >= 1024:
        block = min(block, quarter)
    return max(block, 1)


def _tanh_planes(re2: jax.Array, im2: jax.Array, block_rows: int):
    rows, lanes = re2.shape
    grid = (pl.cdiv(rows, block_rows),)
    spec = pl.BlockSpec((block_rows, lanes), lambda i: (i, 0))
    plane_bytes = rows * lanes * 4

    return pl.pallas_call(
        _tanh_kernel,
        out_shape=(
            jax.ShapeDtypeStruct((rows, lanes), jnp.float32),
            jax.ShapeDtypeStruct((rows, lanes), jnp.float32),
        ),
        grid_spec=pltpu.PrefetchScalarGridSpec(
            num_scalar_prefetch=0,
            grid=grid,
            in_specs=[spec, spec],
            out_specs=[spec, spec],
        ),
        compiler_params=pltpu.CompilerParams(
            dimension_semantics=("parallel",),
            vmem_limit_bytes=32 * 1024 * 1024,
            allow_input_fusion=[True, True],
        ),
        cost_estimate=pl.CostEstimate(
            flops=0,
            transcendentals=2 * rows * lanes,
            bytes_accessed=4 * plane_bytes,  # 2 planes in + 2 planes out
        ),
    )(re2, im2)


@functools.partial(jax.jit, static_argnames=("tile_rows",))
def complex_tanh(x: jax.Array, *, tile_rows: int = 4096) -> jax.Array:
    """ComplexTanh forward: tanh(x.real) + 1j * tanh(x.imag) for complex64 x."""
    assert x.dtype == jnp.complex64, "complex_tanh expects complex64 input"
    orig_shape = x.shape
    n = x.size
    if n == 0:
        return x

    rows = pl.cdiv(n, _LANES)
    padded = rows * _LANES

    # Real / imag planes; pad only the ragged final row (fuses into the same
    # elementwise producer pass -- and, with allow_input_fusion, ideally
    # directly into the pallas_call input DMA).
    re = jnp.real(x).reshape(-1)
    im = jnp.imag(x).reshape(-1)
    if padded != n:
        re = jnp.pad(re, (0, padded - n))
        im = jnp.pad(im, (0, padded - n))
    re2 = re.reshape(rows, _LANES)
    im2 = im.reshape(rows, _LANES)

    block_rows = _choose_block_rows(rows, tile_rows)
    out_re, out_im = _tanh_planes(re2, im2, block_rows)

    # Single fused consumer pass: slice off padding, reshape, recombine.
    out_re = out_re.reshape(-1)[:n].reshape(orig_shape)
    out_im = out_im.reshape(-1)[:n].reshape(orig_shape)
    return jax.lax.complex(out_re, out_im)


def _reference(x_re, x_im):
    return jnp.tanh(x_re) + 1j * jnp.tanh(x_im)


if __name__ == "__main__":
    key = jax.random.PRNGKey(0)

    # Primary (module-sized) check: NCHW complex64 input.
    k_re, k_im = jax.random.split(key)
    shape = (2, 4, 16, 16)
    x_re = jax.random.normal(k_re, shape, dtype=jnp.float32)
    x_im = jax.random.normal(k_im, shape, dtype=jnp.float32)
    x = jax.lax.complex(x_re, x_im)  # complex64

    y = jax.block_until_ready(complex_tanh(x))
    y_ref = _reference(x_re, x_im)
    assert y.dtype == jnp.complex64
    assert y.shape == shape
    assert jnp.allclose(y, y_ref, atol=1e-6, rtol=1e-6)

    # Ragged-size check: total elements not a multiple of 128 (pad-tail path).
    k2_re, k2_im = jax.random.split(jax.random.PRNGKey(1))
    shape2 = (3, 5, 7)
    x2_re = jax.random.normal(k2_re, shape2, dtype=jnp.float32)
    x2_im = jax.random.normal(k2_im, shape2, dtype=jnp.float32)
    x2 = jax.lax.complex(x2_re, x2_im)

    y2 = jax.block_until_ready(complex_tanh(x2))
    y2_ref = _reference(x2_re, x2_im)
    assert y2.dtype == jnp.complex64
    assert y2.shape == shape2
    assert jnp.allclose(y2, y2_ref, atol=1e-6, rtol=1e-6)

    # Multi-block grid check (small tile_rows to force grid > 1 without a
    # large tensor).
    k3_re, k3_im = jax.random.split(jax.random.PRNGKey(2))
    shape3 = (4, 8, 64, 64)
    x3_re = jax.random.normal(k3_re, shape3, dtype=jnp.float32)
    x3_im = jax.random.normal(k3_im, shape3, dtype=jnp.float32)
    x3 = jax.lax.complex(x3_re, x3_im)

    y3 = jax.block_until_ready(complex_tanh(x3, tile_rows=256))
    y3_ref = _reference(x3_re, x3_im)
    assert y3.dtype == jnp.complex64
    assert y3.shape == shape3
    assert jnp.allclose(y3, y3_ref, atol=1e-6, rtol=1e-6)

    print("KERNEL_OK")
</pallas_src>

<mosaic_0001>
module attributes {stable_mosaic.version = 11 : i64} {
  func.func @_tanh_kernel(%arg0: i32, %arg1: memref<16x128xf32, #tpu.memory_space<vmem>>, %arg2: memref<16x128xf32, #tpu.memory_space<vmem>>, %arg3: memref<16x128xf32, #tpu.memory_space<vmem>>, %arg4: memref<16x128xf32, #tpu.memory_space<vmem>>) attributes {dimension_semantics = [#tpu.dimension_semantics<parallel>], iteration_bounds = array<i64: 1>, scalar_prefetch = 0 : i64, scratch_operands = 0 : i64, tpu.core_type = #tpu.core_type<tc>, window_params = [{transform_indices = @transform_0, window_bounds = array<i64: 16, 128>}, {transform_indices = @transform_1, window_bounds = array<i64: 16, 128>}, {transform_indices = @transform_2, window_bounds = array<i64: 16, 128>}, {transform_indices = @transform_3, window_bounds = array<i64: 16, 128>}]} {
    %c0 = arith.constant 0 : index
    %c0_0 = arith.constant 0 : index
    %0 = vector.load %arg1[%c0, %c0_0] : memref<16x128xf32, #tpu.memory_space<vmem>>, vector<16x128xf32>
    %1 = math.tanh %0 : vector<16x128xf32>
    %c0_1 = arith.constant 0 : index
    %c0_2 = arith.constant 0 : index
    %2 = vector.load %arg3[%c0_1, %c0_2] : memref<16x128xf32, #tpu.memory_space<vmem>>, vector<16x128xf32>
    tpu.vector_store %arg3[%c0_1, %c0_2], %1 {strides = array<i32>} : memref<16x128xf32, #tpu.memory_space<vmem>>, vector<16x128xf32>,
    %c0_3 = arith.constant 0 : index
    %c0_4 = arith.constant 0 : index
    %3 = vector.load %arg2[%c0_3, %c0_4] : memref<16x128xf32, #tpu.memory_space<vmem>>, vector<16x128xf32>
    %4 = math.tanh %3 : vector<16x128xf32>
    %c0_5 = arith.constant 0 : index
    %c0_6 = arith.constant 0 : index
    %5 = vector.load %arg4[%c0_5, %c0_6] : memref<16x128xf32, #tpu.memory_space<vmem>>, vector<16x128xf32>
    tpu.vector_store %arg4[%c0_5, %c0_6], %4 {strides = array<i32>} : memref<16x128xf32, #tpu.memory_space<vmem>>, vector<16x128xf32>,
    return
  }
  func.func @transform_0(%arg0: i32) -> (i32, i32) {
    %c0_i32 = arith.constant 0 : i32
    %c0_i32_0 = arith.constant 0 : i32
    return %arg0, %c0_i32 : i32, i32
  }
  func.func @transform_1(%arg0: i32) -> (i32, i32) {
    %c0_i32 = arith.constant 0 : i32
    %c0_i32_0 = arith.constant 0 : i32
    return %arg0, %c0_i32 : i32, i32
  }
  func.func @transform_2(%arg0: i32) -> (i32, i32) {
    %c0_i32 = arith.constant 0 : i32
    %c0_i32_0 = arith.constant 0 : i32
    return %arg0, %c0_i32 : i32, i32
  }
  func.func @transform_3(%arg0: i32) -> (i32, i32) {
    %c0_i32 = arith.constant 0 : i32
    %c0_i32_0 = arith.constant 0 : i32
    return %arg0, %c0_i32 : i32, i32
  }
}

</mosaic_0001>

<llo_original>
// kernel: custom-call.1
$region0: #{custom-call.1}
  %s0 = inlined_call_operand.hbm [shape: c64[2,4,16,16], index: 0, kind: input, shape index: {}]
  %s1 = inlined_call_operand.vmem [shape: f32[2,4,16,16], index: 1, kind: output, shape index: {}]
  %s2 = scalar_lea.hbm %s0, 2048
  $region1: #{custom-call.1} parent=0
    #allocation0 [shape = 's32[1]{0}', space=sflag, size = 0x4, scoped, tag = 'scoped memory for custom-call.1']
    %3 = vsyncpa [#allocation0], 0
    %s4 = sshll.u32 %s1, 4
    %s5 = int_to_ptr.vmem [resolvable:$true] %s4
    %7 = dma.hbm_to_vmem [thread:$0]  %s2, 2048, %s5, [#allocation0]
    %8 = dma.done [#allocation0], 2048
    %9 = vsyncpa [#allocation0], 1

// kernel: custom-call
$region0: #{custom-call}
  %s0 = inlined_call_operand.hbm [shape: c64[2,4,16,16], index: 0, kind: input, shape index: {}]
  %s1 = inlined_call_operand.vmem [shape: f32[2,4,16,16], index: 1, kind: output, shape index: {}]
  $region1: #{custom-call} parent=0
    #allocation0 [shape = 's32[1]{0}', space=sflag, size = 0x4, scoped, tag = 'scoped memory for custom-call']
    %2 = vsyncpa [#allocation0], 0
    %s3 = sshll.u32 %s1, 4
    %s4 = int_to_ptr.vmem [resolvable:$true] %s3
    %6 = dma.hbm_to_vmem [thread:$0]  %s0, 2048, %s4, [#allocation0]
    %7 = dma.done [#allocation0], 2048
    %8 = vsyncpa [#allocation0], 1

// kernel: custom-call.2
$region0: #{custom-call.2}
  %s0 = inlined_call_operand.vmem [shape: f32[2,4,16,16], index: 0, kind: input, shape index: {}]
  %s1 = inlined_call_operand.vmem [shape: f32[2,4,16,16], index: 1, kind: input, shape index: {}]
  %s2 = inlined_call_operand.hbm [shape: c64[2,4,16,16], index: 2, kind: output, shape index: {}]
  %s3 = scalar_lea.hbm %s2, 2048
  $region1: #{custom-call.2} parent=0
    #allocation0 [shape = 's32[1]{0}', space=sflag, size = 0x4, scoped, tag = 'scoped memory for custom-call.2']
    %4 = vsyncpa [#allocation0], 0
    %s5 = sshll.u32 %s0, 4
    %s6 = int_to_ptr.vmem [resolvable:$true] %s5
    %8 = dma.vmem_to_hbm [thread:$0]  %s6, 2048, %s2, [#allocation0]
    %9 = dma.done [#allocation0], 2048
    %10 = vsyncpa [#allocation0], 1
  $region2: #{custom-call.2} parent=0
    #allocation1 [shape = 's32[1]{0}', space=sflag, size = 0x4, scoped, tag = 'scoped memory for custom-call.2']
    %11 = vsyncpa [#allocation1], 0
    %s12 = sshll.u32 %s1, 4
    %s13 = int_to_ptr.vmem [resolvable:$true] %s12
    %15 = dma.vmem_to_hbm [thread:$0]  %s13, 2048, %s3, [#allocation1]
    %16 = dma.done [#allocation1], 2048
    %17 = vsyncpa [#allocation1], 1

// kernel: complex_tanh.1
$region0: #{complex_tanh.1}
  #allocation0 [shape = 'u32[]', space=smem, size = 0x4, offset = 0x4, fixed_abs, tag = 'smem constant byte address 0x4 - core index']
  #allocation1 [shape = 'u32[144,128]{1,0:T(1,128)}', space=vmem, size = 0x12000, scoped, tag = 'internal scratch']
  %s0 = inlined_call_operand.vmem [shape: f32[16,128], index: 0, kind: input, shape index: {}]
  %s1 = inlined_call_operand.vmem [shape: f32[16,128], index: 1, kind: input, shape index: {}]
  %s2 = inlined_call_operand.vmem [shape: f32[16,128], index: 2, kind: output, shape index: {0}]
  %s3 = inlined_call_operand.vmem [shape: f32[16,128], index: 3, kind: output, shape index: {1}]
  %4 = xla_tuple %s2, %s3
  %s5 = sld [smem:[#allocation0]]
  $region26: #{complex_tanh.1} parent=0
    _
  %s7 = ssub.s32 1, %s5
  %s8 = scalar_select 0, %s7, %s5
  // Predicated region
  $region2: #{complex_tanh.1} parent=0 // pred_check
    _
  $region3: #{complex_tanh.1} parent=0 // pred_check_branch
    %10 = sbr.rel (0) target = $region5
  $region4: #{complex_tanh.1} parent=0 // pred_region
    _
  $region5: #{complex_tanh.1} parent=0 // pred_fallthru
    _
  // Predicated region
  $region6: #{complex_tanh.1} parent=0 // pred_check
    _
  $region7: #{complex_tanh.1} parent=0 // pred_check_branch
    %12 = sbr.rel (0) target = $region9
  $region8: #{complex_tanh.1} parent=0 // pred_region
    _
  $region9: #{complex_tanh.1} parent=0 // pred_fallthru
    _
  %v13 = vld [vmem:[%s0] sm:$0xff]
  %v14 = vld [vmem:[%s0 + $0x8] sm:$0xff]
  %v15 = vtanh.pop %v13
  %v16 = vtanh.pop %v14
  %17 = vst [vmem:[%s2] sm:$0xff] %v15
  %18 = vst [vmem:[%s2 + $0x8] sm:$0xff] %v16
  %v19 = vld [vmem:[%s1] sm:$0xff]
  %v20 = vld [vmem:[%s1 + $0x8] sm:$0xff]
  %v21 = vtanh.pop %v19
  %v22 = vtanh.pop %v20
  %23 = vst [vmem:[%s3] sm:$0xff] %v21
  %24 = vst [vmem:[%s3 + $0x8] sm:$0xff] %v22
  // Predicated region
  $region10: #{complex_tanh.1} parent=0 // pred_check
    _
  $region11: #{complex_tanh.1} parent=0 // pred_check_branch
    %26 = sbr.rel (0) target = $region13
  $region12: #{complex_tanh.1} parent=0 // pred_region
    _
  $region13: #{complex_tanh.1} parent=0 // pred_fallthru
    _
  // Predicated region
  $region14: #{complex_tanh.1} parent=0 // pred_check
    _
  $region15: #{complex_tanh.1} parent=0 // pred_check_branch
    %28 = sbr.rel (0) target = $region17
  $region16: #{complex_tanh.1} parent=0 // pred_region
    _
  $region17: #{complex_tanh.1} parent=0 // pred_fallthru
    _
  // Predicated region
  $region18: #{complex_tanh.1} parent=0 // pred_check
    _
  $region19: #{complex_tanh.1} parent=0 // pred_check_branch
    %30 = sbr.rel (0) target = $region21
  $region20: #{complex_tanh.1} parent=0 // pred_region
    _
  $region21: #{complex_tanh.1} parent=0 // pred_fallthru
    _
  // Predicated region
  $region22: #{complex_tanh.1} parent=0 // pred_check
    _
  $region23: #{complex_tanh.1} parent=0 // pred_check_branch
    %32 = sbr.rel (0) target = $region25
  $region24: #{complex_tanh.1} parent=0 // pred_region
    _
  $region25: #{complex_tanh.1} parent=0 // pred_fallthru
    _

</llo_original>
